<compile_context>
chip_gen: v6e
topology: v6e:2x2x1
jax: 0.10.0
libtpu: 0.0.40
codegen_flags: <defaults>
</compile_context>

<pallas_src>
import functools

import jax
import jax.numpy as jnp
from jax import lax
from jax.experimental import pallas as pl
from jax.experimental.pallas import tpu as pltpu


LN_EPS = 1e-5  # PyTorch nn.LayerNorm default


def _round_up(a, b):
    return (a + b - 1) // b * b


def ffn_kernel(x_ref, gamma_ref, beta_ref, w1_ref, b1_ref, w2_ref, b2_ref,
               o_ref, normed_ref, acc_ref, *, mm_dtype):
    """One (row-tile, d_ff-tile) grid step.

    x_ref:      (tm, d_model)     input rows (only consumed at f == 0)
    gamma_ref:  (1, d_model)      LayerNorm weight (f32)
    beta_ref:   (1, d_model)      LayerNorm bias   (f32)
    w1_ref:     (d_model, tf)     feed_forward1 weight chunk (mm_dtype)
    b1_ref:     (1, tf)           feed_forward1 bias chunk   (f32)
    w2_ref:     (tf, d_model)     feed_forward2 weight chunk (mm_dtype)
    b2_ref:     (1, d_model)      feed_forward2 bias         (f32)
    o_ref:      (tm, d_model)     output rows (written at last f)
    normed_ref: (tm, d_model) f32 scratch: LayerNorm output (resident over f)
    acc_ref:    (tm, d_model) f32 scratch: second-matmul accumulator
    """
    f = pl.program_id(1)

    @pl.when(f == 0)
    def _():
        # LayerNorm over last dim (biased variance, matching PyTorch), in f32.
        x = x_ref[...].astype(jnp.float32)
        mean = jnp.mean(x, axis=-1, keepdims=True)
        centered = x - mean
        var = jnp.mean(centered * centered, axis=-1, keepdims=True)
        normed = centered * lax.rsqrt(var + LN_EPS)
        normed = (normed * gamma_ref[...].astype(jnp.float32)
                  + beta_ref[...].astype(jnp.float32))
        normed_ref[...] = normed
        acc_ref[...] = jnp.zeros_like(acc_ref)

    # feed_forward1 chunk -> ReLU (dropout1 identity in eval mode).
    normed_mm = normed_ref[...].astype(mm_dtype)
    h = jnp.dot(normed_mm, w1_ref[...].astype(mm_dtype),
                preferred_element_type=jnp.float32)
    h = jnp.maximum(h + b1_ref[...].astype(jnp.float32), 0.0)

    # feed_forward2 chunk, accumulated in f32 (dropout2 identity in eval mode).
    acc_ref[...] += jnp.dot(h.astype(mm_dtype), w2_ref[...].astype(mm_dtype),
                            preferred_element_type=jnp.float32)

    @pl.when(f == pl.num_programs(1) - 1)
    def _():
        # residual is added to the *normalized* input (as in the PyTorch module)
        out = normed_ref[...] + acc_ref[...] + b2_ref[...].astype(jnp.float32)
        o_ref[...] = out.astype(o_ref.dtype)


@functools.partial(jax.jit, static_argnames=("tm", "tf", "mm_dtype"))
def feed_forward_block(x, gamma, beta, w1, b1, w2, b2, *,
                       tm=256, tf=512, mm_dtype=jnp.bfloat16):
    """x: (batch, seq, d_model). Returns same shape/dtype.

    tm: row tile (multiple of 8; 128/256-aligned at production sizes).
    tf: d_feed_forward tile (multiple of 128 when d_ff is tiled).
    mm_dtype: MXU input dtype for the two matmuls (f32 accumulation regardless).
    """
    batch, seq, d_model = x.shape
    d_ff = w1.shape[1]
    n = batch * seq

    # --- tiling / padding -------------------------------------------------
    tm_eff = min(tm, _round_up(n, 8))          # sublane-aligned row tile
    n_pad = _round_up(n, tm_eff)

    if d_ff <= tf:                             # small d_ff: single reduction step
        tf_eff = d_ff
        dff_pad = d_ff
    else:                                      # stream d_ff in lane-aligned chunks
        tf_eff = tf
        dff_pad = _round_up(d_ff, tf_eff)

    x2 = x.reshape(n, d_model)
    if n_pad != n:
        x2 = jnp.pad(x2, ((0, n_pad - n), (0, 0)))

    # Canonical 2D params; weights streamed in the MXU input dtype.
    gamma2 = jnp.asarray(gamma, jnp.float32).reshape(1, d_model)
    beta2 = jnp.asarray(beta, jnp.float32).reshape(1, d_model)
    b1_2 = jnp.asarray(b1, jnp.float32).reshape(1, d_ff)
    b2_2 = jnp.asarray(b2, jnp.float32).reshape(1, d_model)
    w1c = w1.astype(mm_dtype)
    w2c = w2.astype(mm_dtype)
    if dff_pad != d_ff:
        w1c = jnp.pad(w1c, ((0, 0), (0, dff_pad - d_ff)))
        b1_2 = jnp.pad(b1_2, ((0, 0), (0, dff_pad - d_ff)))
        w2c = jnp.pad(w2c, ((0, dff_pad - d_ff), (0, 0)))

    grid = (n_pad // tm_eff, dff_pad // tf_eff)

    # --- VMEM budget & cost estimate ---------------------------------------
    x_item = x2.dtype.itemsize
    w_item = jnp.dtype(mm_dtype).itemsize
    vmem_need = (
        2 * tm_eff * d_model * x_item                        # x tiles (double buffered)
        + 2 * tm_eff * d_model * x_item                      # out tiles
        + 2 * (d_model * tf_eff + tf_eff * d_model) * w_item # w1/w2 tiles
        + 2 * (tf_eff + 3 * d_model) * 4                     # b1, gamma, beta, b2
        + 2 * tm_eff * d_model * 4                           # normed + acc scratch
    )
    vmem_limit = int(min(max(vmem_need * 1.5, 16 * 2**20), 64 * 2**20))

    cost = pl.CostEstimate(
        flops=4 * n_pad * d_model * dff_pad,                 # two matmuls
        transcendentals=n_pad,                               # rsqrt per row
        bytes_accessed=(2 * n_pad * d_model * x_item
                        + (n_pad // tm_eff) * 2 * d_model * dff_pad * w_item),
    )

    kernel = functools.partial(ffn_kernel, mm_dtype=mm_dtype)

    out2 = pl.pallas_call(
        kernel,
        out_shape=jax.ShapeDtypeStruct((n_pad, d_model), x.dtype),
        grid_spec=pltpu.PrefetchScalarGridSpec(
            num_scalar_prefetch=0,
            grid=grid,
            in_specs=[
                pl.BlockSpec((tm_eff, d_model), lambda i, f: (i, 0)),   # x rows
                pl.BlockSpec((1, d_model), lambda i, f: (0, 0)),        # gamma
                pl.BlockSpec((1, d_model), lambda i, f: (0, 0)),        # beta
                pl.BlockSpec((d_model, tf_eff), lambda i, f: (0, f)),   # w1 chunk
                pl.BlockSpec((1, tf_eff), lambda i, f: (0, f)),         # b1 chunk
                pl.BlockSpec((tf_eff, d_model), lambda i, f: (f, 0)),   # w2 chunk
                pl.BlockSpec((1, d_model), lambda i, f: (0, 0)),        # b2
            ],
            out_specs=pl.BlockSpec((tm_eff, d_model), lambda i, f: (i, 0)),
            scratch_shapes=[
                pltpu.VMEM((tm_eff, d_model), jnp.float32),  # normed (resident over f)
                pltpu.VMEM((tm_eff, d_model), jnp.float32),  # accumulator
            ],
        ),
        compiler_params=pltpu.CompilerParams(
            dimension_semantics=("parallel", "arbitrary"),
            vmem_limit_bytes=vmem_limit,
        ),
        cost_estimate=cost,
    )(x2, gamma2, beta2, w1c, b1_2, w2c, b2_2)

    return out2[:n].reshape(batch, seq, d_model)


def reference_ffn(x, gamma, beta, w1, b1, w2, b2, mm_dtype=jnp.float32):
    """Pure-JAX reference mirroring the PyTorch forward (eval mode)."""
    shape = x.shape
    xf = x.reshape(-1, shape[-1]).astype(jnp.float32)
    mean = jnp.mean(xf, axis=-1, keepdims=True)
    var = jnp.mean((xf - mean) ** 2, axis=-1, keepdims=True)
    normed = (xf - mean) * lax.rsqrt(var + LN_EPS)
    normed = normed * gamma.astype(jnp.float32) + beta.astype(jnp.float32)
    h = jnp.dot(normed.astype(mm_dtype), w1.astype(mm_dtype),
                preferred_element_type=jnp.float32) + b1
    h = jnp.maximum(h, 0.0)
    y = jnp.dot(h.astype(mm_dtype), w2.astype(mm_dtype),
                preferred_element_type=jnp.float32) + b2
    return (normed + y).reshape(shape).astype(x.dtype)


def _make_params(key, d_model, d_ff):
    kg, kb, kw1, kb1, kw2, kb2 = jax.random.split(key, 6)
    gamma = (1.0 + 0.01 * jax.random.normal(kg, (1, d_model))).astype(jnp.float32)
    beta = (0.01 * jax.random.normal(kb, (1, d_model))).astype(jnp.float32)
    # nn.Linear stores weight as (out, in); we keep (in, out) for row-major matmul.
    lim1 = 1.0 / (d_model ** 0.5)
    lim2 = 1.0 / (d_ff ** 0.5)
    w1 = jax.random.uniform(kw1, (d_model, d_ff), minval=-lim1, maxval=lim1,
                            dtype=jnp.float32)
    b1 = jax.random.uniform(kb1, (1, d_ff), minval=-lim1, maxval=lim1,
                            dtype=jnp.float32)
    w2 = jax.random.uniform(kw2, (d_ff, d_model), minval=-lim2, maxval=lim2,
                            dtype=jnp.float32)
    b2 = jax.random.uniform(kb2, (1, d_model), minval=-lim2, maxval=lim2,
                            dtype=jnp.float32)
    return gamma, beta, w1, b1, w2, b2


if __name__ == "__main__":
    key = jax.random.PRNGKey(0)
    k1, k2, k3, k4 = jax.random.split(key, 4)

    # --- Test 1: toy shapes (batch=2, seq=8, d_model=32, d_feed_forward=64) ---
    batch, seq, d_model, d_ff = 2, 8, 32, 64
    x = jax.random.normal(k1, (batch, seq, d_model), dtype=jnp.float32)
    params = _make_params(k2, d_model, d_ff)

    out = jax.block_until_ready(feed_forward_block(x, *params))
    assert out.shape == x.shape and out.dtype == x.dtype
    ref_mm = reference_ffn(x, *params, mm_dtype=jnp.bfloat16)   # same matmul dtype
    ref_f32 = reference_ffn(x, *params)                          # full-f32 reference
    assert jnp.allclose(out, ref_mm, atol=2e-3, rtol=2e-3), "mismatch vs bf16 reference"
    assert jnp.allclose(out, ref_f32, atol=8e-2, rtol=8e-2), "mismatch vs f32 reference"

    # --- Test 2: exercises row padding + d_ff tiling/accumulation (grid=(2,3)) ---
    batch, seq, d_model, d_ff = 2, 40, 128, 384
    x = jax.random.normal(k3, (batch, seq, d_model), dtype=jnp.float32)
    params = _make_params(k4, d_model, d_ff)

    out = jax.block_until_ready(feed_forward_block(x, *params, tm=64, tf=128))
    ref_mm = reference_ffn(x, *params, mm_dtype=jnp.bfloat16)
    assert out.shape == x.shape and out.dtype == x.dtype
    assert jnp.allclose(out, ref_mm, atol=2e-3, rtol=2e-3), "mismatch vs bf16 reference (tiled)"

    print("KERNEL_OK")
</pallas_src>

<mosaic_0001>
module attributes {stable_mosaic.version = 11 : i64} {
  func.func @ffn_kernel(%arg0: i32, %arg1: i32, %arg2: memref<16x32xf32, #tpu.memory_space<vmem>>, %arg3: memref<1x32xf32, #tpu.memory_space<vmem>>, %arg4: memref<1x32xf32, #tpu.memory_space<vmem>>, %arg5: memref<32x64xbf16, #tpu.memory_space<vmem>>, %arg6: memref<1x64xf32, #tpu.memory_space<vmem>>, %arg7: memref<64x32xbf16, #tpu.memory_space<vmem>>, %arg8: memref<1x32xf32, #tpu.memory_space<vmem>>, %arg9: memref<16x32xf32, #tpu.memory_space<vmem>>, %arg10: memref<16x32xf32, #tpu.memory_space<vmem>>, %arg11: memref<16x32xf32, #tpu.memory_space<vmem>>) attributes {dimension_semantics = [#tpu.dimension_semantics<parallel>, #tpu.dimension_semantics<arbitrary>], iteration_bounds = array<i64: 1, 1>, scalar_prefetch = 0 : i64, scratch_operands = 2 : i64, tpu.core_type = #tpu.core_type<tc>, window_params = [{transform_indices = @transform_0, window_bounds = array<i64: 16, 32>}, {pipeline_mode = #tpu.pipeline_mode<synchronous>, transform_indices = @transform_1, window_bounds = array<i64: 1, 32>}, {pipeline_mode = #tpu.pipeline_mode<synchronous>, transform_indices = @transform_2, window_bounds = array<i64: 1, 32>}, {transform_indices = @transform_3, window_bounds = array<i64: 32, 64>}, {transform_indices = @transform_4, window_bounds = array<i64: 1, 64>}, {transform_indices = @transform_5, window_bounds = array<i64: 64, 32>}, {pipeline_mode = #tpu.pipeline_mode<synchronous>, transform_indices = @transform_6, window_bounds = array<i64: 1, 32>}, {transform_indices = @transform_7, window_bounds = array<i64: 16, 32>}]} {
    %c0_i32 = arith.constant 0 : i32
    %0 = arith.cmpi eq, %arg1, %c0_i32 : i32
    %1 = arith.extui %0 : i1 to i32
    %c0_i32_0 = arith.constant 0 : i32
    %2 = arith.cmpi ne, %1, %c0_i32_0 : i32
    scf.if %2 {
      %c0_16 = arith.constant 0 : index
      %c0_17 = arith.constant 0 : index
      %21 = vector.load %arg2[%c0_16, %c0_17] : memref<16x32xf32, #tpu.memory_space<vmem>>, vector<16x32xf32>
      %cst_18 = arith.constant dense<0.000000e+00> : vector<16xf32>
      %22 = vector.multi_reduction <add>, %21, %cst_18 [1] : vector<16x32xf32> to vector<16xf32>
      %23 = vector.shape_cast %22 : vector<16xf32> to vector<16x1xf32>
      %cst_19 = arith.constant 3.200000e+01 : f32
      %24 = vector.broadcast %cst_19 : f32 to vector<16x1xf32>
      %25 = arith.divf %23, %24 : vector<16x1xf32>
      %26 = vector.broadcast %25 : vector<16x1xf32> to vector<16x32xf32>
      %27 = arith.subf %21, %26 : vector<16x32xf32>
      %28 = arith.mulf %27, %27 : vector<16x32xf32>
      %cst_20 = arith.constant dense<0.000000e+00> : vector<16xf32>
      %29 = vector.multi_reduction <add>, %28, %cst_20 [1] : vector<16x32xf32> to vector<16xf32>
      %30 = vector.shape_cast %29 : vector<16xf32> to vector<16x1xf32>
      %cst_21 = arith.constant 3.200000e+01 : f32
      %31 = vector.broadcast %cst_21 : f32 to vector<16x1xf32>
      %32 = arith.divf %30, %31 : vector<16x1xf32>
      %cst_22 = arith.constant 9.99999974E-6 : f32
      %33 = vector.broadcast %cst_22 : f32 to vector<16x1xf32>
      %34 = arith.addf %32, %33 : vector<16x1xf32>
      %35 = math.rsqrt %34 : vector<16x1xf32>
      %36 = vector.broadcast %35 : vector<16x1xf32> to vector<16x32xf32>
      %37 = arith.mulf %27, %36 : vector<16x32xf32>
      %c0_23 = arith.constant 0 : index
      %c0_24 = arith.constant 0 : index
      %38 = vector.load %arg3[%c0_23, %c0_24] : memref<1x32xf32, #tpu.memory_space<vmem>>, vector<1x32xf32>
      %39 = vector.broadcast %38 : vector<1x32xf32> to vector<16x32xf32>
      %40 = arith.mulf %37, %39 : vector<16x32xf32>
      %c0_25 = arith.constant 0 : index
      %c0_26 = arith.constant 0 : index
      %41 = vector.load %arg4[%c0_25, %c0_26] : memref<1x32xf32, #tpu.memory_space<vmem>>, vector<1x32xf32>
      %42 = vector.broadcast %41 : vector<1x32xf32> to vector<16x32xf32>
      %43 = arith.addf %40, %42 : vector<16x32xf32>
      %c0_27 = arith.constant 0 : index
      %c0_28 = arith.constant 0 : index
      %44 = vector.load %arg10[%c0_27, %c0_28] : memref<16x32xf32, #tpu.memory_space<vmem>>, vector<16x32xf32>
      tpu.vector_store %arg10[%c0_27, %c0_28], %43 {strides = array<i32>} : memref<16x32xf32, #tpu.memory_space<vmem>>, vector<16x32xf32>,
      %cst_29 = arith.constant 0.000000e+00 : f32
      %45 = vector.broadcast %cst_29 : f32 to vector<16x32xf32>
      %c0_30 = arith.constant 0 : index
      %c0_31 = arith.constant 0 : index
      %46 = vector.load %arg11[%c0_30, %c0_31] : memref<16x32xf32, #tpu.memory_space<vmem>>, vector<16x32xf32>
      tpu.vector_store %arg11[%c0_30, %c0_31], %45 {strides = array<i32>} : memref<16x32xf32, #tpu.memory_space<vmem>>, vector<16x32xf32>,
    } else {
    }
    %c0 = arith.constant 0 : index
    %c0_1 = arith.constant 0 : index
    %3 = vector.load %arg10[%c0, %c0_1] : memref<16x32xf32, #tpu.memory_space<vmem>>, vector<16x32xf32>
    %4 = arith.truncf %3 : vector<16x32xf32> to vector<16x32xbf16>
    %c0_2 = arith.constant 0 : index
    %c0_3 = arith.constant 0 : index
    %5 = vector.load %arg5[%c0_2, %c0_3] : memref<32x64xbf16, #tpu.memory_space<vmem>>, vector<32x64xbf16>
    %cst = arith.constant dense<0.000000e+00> : vector<16x64xf32>
    %6 = tpu.matmul %4, %5, %cst {dimension_numbers = #tpu.dot_dimension_numbers<[1], [0], [0], [1], [0, 0, 1, 1], [], []>} : vector<16x32xbf16>, vector<32x64xbf16>, vector<16x64xf32> -> vector<16x64xf32>
    %c0_4 = arith.constant 0 : index
    %c0_5 = arith.constant 0 : index
    %7 = vector.load %arg6[%c0_4, %c0_5] : memref<1x64xf32, #tpu.memory_space<vmem>>, vector<1x64xf32>
    %8 = vector.broadcast %7 : vector<1x64xf32> to vector<16x64xf32>
    %9 = arith.addf %6, %8 : vector<16x64xf32>
    %cst_6 = arith.constant 0.000000e+00 : f32
    %10 = vector.broadcast %cst_6 : f32 to vector<16x64xf32>
    %11 = arith.maximumf %9, %10 : vector<16x64xf32>
    %c0_7 = arith.constant 0 : index
    %c0_8 = arith.constant 0 : index
    %12 = vector.load %arg11[%c0_7, %c0_8] : memref<16x32xf32, #tpu.memory_space<vmem>>, vector<16x32xf32>
    %13 = arith.truncf %11 : vector<16x64xf32> to vector<16x64xbf16>
    %c0_9 = arith.constant 0 : index
    %c0_10 = arith.constant 0 : index
    %14 = vector.load %arg7[%c0_9, %c0_10] : memref<64x32xbf16, #tpu.memory_space<vmem>>, vector<64x32xbf16>
    %cst_11 = arith.constant dense<0.000000e+00> : vector<16x32xf32>
    %15 = tpu.matmul %13, %14, %cst_11 {dimension_numbers = #tpu.dot_dimension_numbers<[1], [0], [0], [1], [0, 0, 1, 1], [], []>} : vector<16x64xbf16>, vector<64x32xbf16>, vector<16x32xf32> -> vector<16x32xf32>
    %16 = arith.addf %12, %15 : vector<16x32xf32>
    %c0_12 = arith.constant 0 : index
    %c0_13 = arith.constant 0 : index
    %17 = vector.load %arg11[%c0_12, %c0_13] : memref<16x32xf32, #tpu.memory_space<vmem>>, vector<16x32xf32>
    tpu.vector_store %arg11[%c0_12, %c0_13], %16 {strides = array<i32>} : memref<16x32xf32, #tpu.memory_space<vmem>>, vector<16x32xf32>,
    %c0_i32_14 = arith.constant 0 : i32
    %18 = arith.cmpi eq, %arg1, %c0_i32_14 : i32
    %19 = arith.extui %18 : i1 to i32
    %c0_i32_15 = arith.constant 0 : i32
    %20 = arith.cmpi ne, %19, %c0_i32_15 : i32
    scf.if %20 {
      %c0_16 = arith.constant 0 : index
      %c0_17 = arith.constant 0 : index
      %21 = vector.load %arg10[%c0_16, %c0_17] : memref<16x32xf32, #tpu.memory_space<vmem>>, vector<16x32xf32>
      %c0_18 = arith.constant 0 : index
      %c0_19 = arith.constant 0 : index
      %22 = vector.load %arg11[%c0_18, %c0_19] : memref<16x32xf32, #tpu.memory_space<vmem>>, vector<16x32xf32>
      %23 = arith.addf %21, %22 : vector<16x32xf32>
      %c0_20 = arith.constant 0 : index
      %c0_21 = arith.constant 0 : index
      %24 = vector.load %arg8[%c0_20, %c0_21] : memref<1x32xf32, #tpu.memory_space<vmem>>, vector<1x32xf32>
      %25 = vector.broadcast %24 : vector<1x32xf32> to vector<16x32xf32>
      %26 = arith.addf %23, %25 : vector<16x32xf32>
      %c0_22 = arith.constant 0 : index
      %c0_23 = arith.constant 0 : index
      %27 = vector.load %arg9[%c0_22, %c0_23] : memref<16x32xf32, #tpu.memory_space<vmem>>, vector<16x32xf32>
      tpu.vector_store %arg9[%c0_22, %c0_23], %26 {strides = array<i32>} : memref<16x32xf32, #tpu.memory_space<vmem>>, vector<16x32xf32>,
    } else {
    }
    return
  }
  func.func @transform_0(%arg0: i32, %arg1: i32) -> (i32, i32) {
    %c0_i32 = arith.constant 0 : i32
    %c0_i32_0 = arith.constant 0 : i32
    return %arg0, %c0_i32 : i32, i32
  }
  func.func @transform_1(%arg0: i32, %arg1: i32) -> (i32, i32) {
    %c0_i32 = arith.constant 0 : i32
    %c0_i32_0 = arith.constant 0 : i32
    %c0_i32_1 = arith.constant 0 : i32
    return %c0_i32, %c0_i32_0 : i32, i32
  }
  func.func @transform_2(%arg0: i32, %arg1: i32) -> (i32, i32) {
    %c0_i32 = arith.constant 0 : i32
    %c0_i32_0 = arith.constant 0 : i32
    %c0_i32_1 = arith.constant 0 : i32
    return %c0_i32, %c0_i32_0 : i32, i32
  }
  func.func @transform_3(%arg0: i32, %arg1: i32) -> (i32, i32) {
    %c0_i32 = arith.constant 0 : i32
    %c0_i32_0 = arith.constant 0 : i32
    return %c0_i32, %arg1 : i32, i32
  }
  func.func @transform_4(%arg0: i32, %arg1: i32) -> (i32, i32) {
    %c0_i32 = arith.constant 0 : i32
    %c0_i32_0 = arith.constant 0 : i32
    return %c0_i32, %arg1 : i32, i32
  }
  func.func @transform_5(%arg0: i32, %arg1: i32) -> (i32, i32) {
    %c0_i32 = arith.constant 0 : i32
    %c0_i32_0 = arith.constant 0 : i32
    return %arg1, %c0_i32 : i32, i32
  }
  func.func @transform_6(%arg0: i32, %arg1: i32) -> (i32, i32) {
    %c0_i32 = arith.constant 0 : i32
    %c0_i32_0 = arith.constant 0 : i32
    %c0_i32_1 = arith.constant 0 : i32
    return %c0_i32, %c0_i32_0 : i32, i32
  }
  func.func @transform_7(%arg0: i32, %arg1: i32) -> (i32, i32) {
    %c0_i32 = arith.constant 0 : i32
    %c0_i32_0 = arith.constant 0 : i32
    return %arg0, %c0_i32 : i32, i32
  }
}

</mosaic_0001>

<llo_original>
// kernel: feed_forward_block.1
$region0: #{feed_forward_block.1}
  #allocation0 [shape = 'u32[]', space=smem, size = 0x4, offset = 0x4, fixed_abs, tag = 'smem constant byte address 0x4 - core index']
  #allocation1 [shape = 'u32[144,128]{1,0:T(1,128)}', space=vmem, size = 0x12000, scoped, tag = 'internal scratch']
  #allocation2 [shape = 'f32[16,32]{1,0:T(8,128)}', space=vmem, size = 0x2000, scoped, tag = 'scratch operand']
  #allocation3 [shape = 'f32[16,32]{1,0:T(8,128)}', space=vmem, size = 0x2000, scoped, tag = 'scratch operand']
  %s0 = inlined_call_operand.vmem [shape: f32[16,32], index: 0, kind: input, shape index: {}]
  %s1 = inlined_call_operand.vmem [shape: f32[1,32], index: 1, kind: input, shape index: {}]
  %s2 = inlined_call_operand.vmem [shape: f32[1,32], index: 2, kind: input, shape index: {}]
  %s3 = inlined_call_operand.vmem [shape: bf16[32,64], index: 3, kind: input, shape index: {}]
  %s4 = inlined_call_operand.vmem [shape: f32[1,64], index: 4, kind: input, shape index: {}]
  %s5 = inlined_call_operand.vmem [shape: bf16[64,32], index: 5, kind: input, shape index: {}]
  %s6 = inlined_call_operand.vmem [shape: f32[1,32], index: 6, kind: input, shape index: {}]
  %s7 = inlined_call_operand.hbm [shape: f32[16,32], index: 7, kind: output, shape index: {}]
  %s8 = sld [smem:[#allocation0]]
  $region46: #{feed_forward_block.1} parent=0
    _
  %s10 = ssub.s32 1, %s8
  %s11 = scalar_select 0, %s10, %s8
  $region1: #{feed_forward_block.1} parent=0
    #allocation4 [shape = 'u8[8192]{0}', space=vmem, size = 0x2000, scoped, tag = 'output window, operand 0, single buffered']
    #allocation5 [shape = 's32[1]{0}', space=sflag, size = 0x4, scoped, tag = 'scoped memory for feed_forward_block.1']
    %12 = vsyncpa [#allocation5], 0
    // Predicated region
    $region2: #{feed_forward_block.1} parent=1 // pred_check
      _
    $region3: #{feed_forward_block.1} parent=1 // pred_check_branch
      %14 = sbr.rel (0) target = $region5
    $region4: #{feed_forward_block.1} parent=1 // pred_region
      _
    $region5: #{feed_forward_block.1} parent=1 // pred_fallthru
      _
    // Predicated region
    $region6: #{feed_forward_block.1} parent=1 // pred_check
      _
    $region7: #{feed_forward_block.1} parent=1 // pred_check_branch
      %16 = sbr.rel (0) target = $region9
    $region8: #{feed_forward_block.1} parent=1 // pred_region
      _
    $region9: #{feed_forward_block.1} parent=1 // pred_fallthru
      _
    // Predicated region
    $region10: #{feed_forward_block.1} parent=1 // pred_check
      _
    $region11: #{feed_forward_block.1} parent=1 // pred_check_branch
      %18 = sbr.rel (0) target = $region13
    $region12: #{feed_forward_block.1} parent=1 // pred_region
      _
    $region13: #{feed_forward_block.1} parent=1 // pred_fallthru
      _
    // Predicated region
    $region14: #{feed_forward_block.1} parent=1 // pred_check
      _
    $region15: #{feed_forward_block.1} parent=1 // pred_check_branch
      %20 = sbr.rel (0) target = $region17
    $region16: #{feed_forward_block.1} parent=1 // pred_region
      _
    $region17: #{feed_forward_block.1} parent=1 // pred_fallthru
      _
    // Predicated region
    $region18: #{feed_forward_block.1} parent=1 // pred_check
      _
    $region19: #{feed_forward_block.1} parent=1 // pred_check_branch
      %22 = sbr.rel (0) target = $region21
    $region20: #{feed_forward_block.1} parent=1 // pred_region
      _
    $region21: #{feed_forward_block.1} parent=1 // pred_fallthru
      _
    // Predicated region
    $region22: #{feed_forward_block.1} parent=1 // pred_check
      _
    $region23: #{feed_forward_block.1} parent=1 // pred_check_branch
      %24 = sbr.rel (0) target = $region25
    $region24: #{feed_forward_block.1} parent=1 // pred_region
      _
    $region25: #{feed_forward_block.1} parent=1 // pred_fallthru
      _
    // Predicated region
    $region26: #{feed_forward_block.1} parent=1 // pred_check
      _
    $region27: #{feed_forward_block.1} parent=1 // pred_check_branch
      %26 = sbr.rel (0) target = $region29
    $region28: #{feed_forward_block.1} parent=1 // pred_region
      _
    $region29: #{feed_forward_block.1} parent=1 // pred_fallthru
      _
    %p28 = scmp.eq.s32.totalorder 0, 0
    // Predicated region
    $region30: #{feed_forward_block.1} parent=1 // pred_check
      %p29 = pneg %p28
    $region31: #{feed_forward_block.1} parent=1 // pred_check_branch
      %31 = sbr.rel (%p29) target = $region33
    $region32: #{feed_forward_block.1} parent=1 // pred_region
      %v32 = vld [vmem:[%s0] sm:$0xff]
      %v33 = vld [vmem:[%s0 + $0x8] sm:$0xff]
      %vm34 = vcmask 261120
      %v35 = vsel %vm34, %v32, 0.0
      %36 = vadd.xlane.f32.xlu0 %v35
      %v37 = vpop.xlane.xlu0 %36
      %v38 = vsel %vm34, %v33, 0.0
      %39 = vadd.xlane.f32.xlu0 %v38
      %v40 = vpop.xlane.xlu0 %39
      %v41 = vrcp.pop 32.0
      %v42 = vmul.f32 %v37, %v41
      %v43 = vmul.f32 %v40, %v41
      %v44 = vsub.f32 %v32, %v42
      %v45 = vsub.f32 %v33, %v43
      %v46 = vmul.f32 %v44, %v44
      %v47 = vmul.f32 %v45, %v45
      %v48 = vsel %vm34, %v46, 0.0
      %49 = vadd.xlane.f32.xlu0 %v48
      %v50 = vpop.xlane.xlu0 %49
      %v51 = vsel %vm34, %v47, 0.0
      %52 = vadd.xlane.f32.xlu0 %v51
      %v53 = vpop.xlane.xlu0 %52
      %v54 = vmul.f32 %v50, %v41
      %v55 = vmul.f32 %v53, %v41
      %v56 = vadd.f32 %v54, 1e-05
      %v57 = vadd.f32 %v55, 1e-05
      %v58 = vrsqrt.pop %v56
      %v59 = vrsqrt.pop %v57
      %v60 = vmul.f32 %v44, %v58
      %v61 = vmul.f32 %v45, %v59
      %v62 = vld [vmem:[%s1] sm:$0x1]
      %v64 = vlaneseq
      %v65 = vshrl.u32 %v64, 7
      %v66 = vsub.s32 0, %v65
      %v67 = vrot.slane %v62, %v66
      %v69 = vmul.f32 %v60, %v67
      %v70 = vmul.f32 %v61, %v67
      %v71 = vld [vmem:[%s2] sm:$0x1]
      %v73 = vlaneseq
      %v74 = vshrl.u32 %v73, 7
      %v75 = vsub.s32 0, %v74
      %v76 = vrot.slane %v71, %v75
      %v78 = vadd.f32 %v69, %v76
      %v79 = vadd.f32 %v70, %v76
      %80 = vst.msk [vmem:[#allocation2] sm:$0xff] %vm34, %v78
      %81 = vst.msk [vmem:[#allocation2 + $0x8] sm:$0xff] %vm34, %v79
      %82 = vst.msk [vmem:[#allocation3] sm:$0xff] %vm34, 0.0
      %83 = vst.msk [vmem:[#allocation3 + $0x8] sm:$0xff] %vm34, 0.0
    $region33: #{feed_forward_block.1} parent=1 // pred_fallthru
      _
    %v84 = vld [vmem:[#allocation2] sm:$0xff]
    %v85 = vld [vmem:[#allocation2 + $0x8] sm:$0xff]
    %v86 = vpack.c.bf16 %v85, %v84
    %v87 = vld [vmem:[%s3] sm:$0xf]
    %v88 = vld [vmem:[%s3 + $0x4] sm:$0xf]
    %v89 = vld [vmem:[%s3 + $0x8] sm:$0xf]
    %v90 = vld [vmem:[%s3 + $0xc] sm:$0xf]
    %v91 = vld [vmem:[%s4] sm:$0x1]
    %v93 = vlaneseq
    %v94 = vshrl.u32 %v93, 7
    %v95 = vsub.s32 0, %v94
    %v96 = vrot.slane %v91, %v95
    %v102 = vunpack.c.l.b16 %v87
    %v103 = vunpack.c.l.b16 %v88
    %v104 = vunpack.c.l.b16 %v89
    %v105 = vunpack.c.l.b16 %v90
    %v106 = vpack.c.b16 %v103, %v102
    %v107 = vpack.c.b16 %v105, %v104
    %vm110 = vcmask 261120
    %v112 = vsel %vm110, %v86, 0
    %114 = vmatprep.subr.bf16.mxu0 0
    %115 = vmatpush1.bf16.msra.mxu0 0
    %116 = vmatprep.subr.bf16.mxu0 0
    %117 = vmatpush1.bf16.msra.mxu0 0
    %118 = vmatprep.subr.bf16.mxu0 0
    %119 = vmatpush1.bf16.msra.mxu0 0
    %120 = vmatprep.subr.bf16.mxu0 0
    %121 = vmatpush1.bf16.msra.mxu0 0
    %122 = vmatprep.subr.bf16.mxu0 0
    %123 = vmatpush1.bf16.msra.mxu0 0
    %124 = vmatprep.subr.bf16.mxu0 0
    %125 = vmatpush1.bf16.msra.mxu0 0
    %126 = vmatprep.subr.bf16.mxu0 0
    %127 = vmatpush1.bf16.msra.mxu0 %v107
    %128 = vmatprep.subr.bf16.mxu0 0
    %129 = vmatpush1.bf16.msra.mxu0 %v106
    %130 = vmatprep.subr.bf16.mxu0 0
    %131 = vmatpush2.bf16.msra.mxu0 0
    %132 = vmatprep.subr.bf16.mxu0 0
    %133 = vmatpush2.bf16.msra.mxu0 0
    %134 = vmatprep.subr.bf16.mxu0 0
    %135 = vmatpush2.bf16.msra.mxu0 0
    %136 = vmatprep.subr.bf16.mxu0 0
    %137 = vmatpush2.bf16.msra.mxu0 0
    %138 = vmatprep.subr.bf16.mxu0 0
    %139 = vmatpush2.bf16.msra.mxu0 0
    %140 = vmatprep.subr.bf16.mxu0 0
    %141 = vmatpush2.bf16.msra.mxu0 0
    %142 = vmatprep.subr.bf16.mxu0 0
    %143 = vmatpush2.bf16.msra.mxu0 0
    %144 = vmatprep.subr.bf16.mxu0 0
    %145 = vmatpush2.bf16.msra.mxu0 0
    %146 = vmatprep.mubr.bf16.mxu0 0
    %147 = vmatmul.mubr.bf16.gmra.mxu0 %v112
    %v148 = vpop.f32.mrf.mxu0
    %v149 = vadd.f32 %v96, %v148
    %v150 = vpop.f32.mrf.mxu0
    %v151 = vpop.f32.mrf.mxu0
    %v152 = vadd.f32 %v96, %v151
    %v153 = vpop.f32.mrf.mxu0
    %154 = vdwg.mxu0
    %v155 = vmax.f32 %v149, 0.0
    %v156 = vmax.f32 %v152, 0.0
    %v157 = vld [vmem:[#allocation3] sm:$0xff]
    %v158 = vld [vmem:[#allocation3 + $0x8] sm:$0xff]
    %v159 = vpack.c.bf16 %v156, %v155
    %v160 = vld [vmem:[%s5] sm:$0xf]
    %v161 = vld [vmem:[%s5 + $0x4] sm:$0xf]
    %v162 = vld [vmem:[%s5 + $0x8] sm:$0xf]
    %v163 = vld [vmem:[%s5 + $0xc] sm:$0xf]
    %v164 = vld [vmem:[%s5 + $0x10] sm:$0xf]
    %v165 = vld [vmem:[%s5 + $0x14] sm:$0xf]
    %v166 = vld [vmem:[%s5 + $0x18] sm:$0xf]
    %v167 = vld [vmem:[%s5 + $0x1c] sm:$0xf]
    %v176 = vunpack.c.l.b16 %v160
    %v177 = vunpack.c.l.b16 %v161
    %v178 = vunpack.c.l.b16 %v162
    %v179 = vunpack.c.l.b16 %v163
    %v180 = vunpack.c.l.b16 %v164
    %v181 = vunpack.c.l.b16 %v165
    %v182 = vunpack.c.l.b16 %v166
    %v183 = vunpack.c.l.b16 %v167
    %v184 = vpack.c.b16 %v177, %v176
    %v185 = vpack.c.b16 %v179, %v178
    %v186 = vpack.c.b16 %v181, %v180
    %v187 = vpack.c.b16 %v183, %v182
    %vm192 = vcmask 523264
    %v194 = vsel %vm192, %v159, 0
    %196 = vmatprep.subr.bf16.mxu0 0
    %197 = vmatpush1.bf16.msra.mxu0 0
    %198 = vmatprep.subr.bf16.mxu0 0
    %199 = vmatpush1.bf16.msra.mxu0 0
    %200 = vmatprep.subr.bf16.mxu0 0
    %201 = vmatpush1.bf16.msra.mxu0 0
    %202 = vmatprep.subr.bf16.mxu0 0
    %203 = vmatpush1.bf16.msra.mxu0 0
    %204 = vmatprep.subr.bf16.mxu0 0
    %205 = vmatpush1.bf16.msra.mxu0 %v187
    %206 = vmatprep.subr.bf16.mxu0 0
    %207 = vmatpush1.bf16.msra.mxu0 %v186
    %208 = vmatprep.subr.bf16.mxu0 0
    %209 = vmatpush1.bf16.msra.mxu0 %v185
    %210 = vmatprep.subr.bf16.mxu0 0
    %211 = vmatpush1.bf16.msra.mxu0 %v184
    %212 = vmatprep.subr.bf16.mxu0 0
    %213 = vmatpush2.bf16.msra.mxu0 0
    %214 = vmatprep.subr.bf16.mxu0 0
    %215 = vmatpush2.bf16.msra.mxu0 0
    %216 = vmatprep.subr.bf16.mxu0 0
    %217 = vmatpush2.bf16.msra.mxu0 0
    %218 = vmatprep.subr.bf16.mxu0 0
    %219 = vmatpush2.bf16.msra.mxu0 0
    %220 = vmatprep.subr.bf16.mxu0 0
    %221 = vmatpush2.bf16.msra.mxu0 0
    %222 = vmatprep.subr.bf16.mxu0 0
    %223 = vmatpush2.bf16.msra.mxu0 0
    %224 = vmatprep.subr.bf16.mxu0 0
    %225 = vmatpush2.bf16.msra.mxu0 0
    %226 = vmatprep.subr.bf16.mxu0 0
    %227 = vmatpush2.bf16.msra.mxu0 0
    %228 = vmatprep.mubr.bf16.mxu0 0
    %229 = vmatmul.mubr.bf16.gmra.mxu0 %v194
    %v230 = vpop.f32.mrf.mxu0
    %v231 = vadd.f32 0.0, %v230
    %v232 = vpop.f32.mrf.mxu0
    %v233 = vpop.f32.mrf.mxu0
    %v234 = vadd.f32 0.0, %v233
    %v235 = vpop.f32.mrf.mxu0
    %236 = vdwg.mxu0
    %v237 = vadd.f32 %v157, %v231
    %v238 = vadd.f32 %v158, %v234
    %239 = vst.msk [vmem:[#allocation3] sm:$0xff] %vm110, %v237
    %240 = vst.msk [vmem:[#allocation3 + $0x8] sm:$0xff] %vm110, %v238
    // Predicated region
    $region34: #{feed_forward_block.1} parent=1 // pred_check
      %p241 = pneg %p28
    $region35: #{feed_forward_block.1} parent=1 // pred_check_branch
      %243 = sbr.rel (%p241) target = $region37
    $region36: #{feed_forward_block.1} parent=1 // pred_region
      %v244 = vld [vmem:[#allocation2] sm:$0xff]
      %v245 = vld [vmem:[#allocation2 + $0x8] sm:$0xff]
      %v246 = vld [vmem:[#allocation3] sm:$0xff]
      %v247 = vld [vmem:[#allocation3 + $0x8] sm:$0xff]
      %v248 = vadd.f32 %v244, %v246
      %v249 = vadd.f32 %v245, %v247
      %v250 = vld [vmem:[%s6] sm:$0x1]
      %v252 = vlaneseq
      %v253 = vshrl.u32 %v252, 7
      %v254 = vsub.s32 0, %v253
      %v255 = vrot.slane %v250, %v254
      %v257 = vadd.f32 %v248, %v255
      %v258 = vadd.f32 %v249, %v255
      %259 = vst.msk [vmem:[#allocation4] sm:$0xff] %vm110, %v257
      %260 = vst.msk [vmem:[#allocation4 + $0x8] sm:$0xff] %vm110, %v258
    $region37: #{feed_forward_block.1} parent=1 // pred_fallthru
      _
    // Predicated region
    $region38: #{feed_forward_block.1} parent=1 // pred_check
      _
    $region39: #{feed_forward_block.1} parent=1 // pred_check_branch
      %262 = sbr.rel (0) target = $region41
    $region40: #{feed_forward_block.1} parent=1 // pred_region
      %s264 = ssub.s32 256, 256
      %265 = vsyncadd [#allocation5], %s264
      %s266 = sshll.u32 [#allocation4], 4
      %s267 = int_to_ptr.vmem [resolvable:$true] %s266
      %272 = dma.vmem_to_hbm [thread:$0]  %s267, 256, %s7, [#allocation5], 128, 128, 8
    $region41: #{feed_forward_block.1} parent=1 // pred_fallthru
      _
    // Predicated region
    $region42: #{feed_forward_block.1} parent=1 // pred_check
      _
    $region43: #{feed_forward_block.1} parent=1 // pred_check_branch
      %274 = sbr.rel (0) target = $region45
    $region44: #{feed_forward_block.1} parent=1 // pred_region
      %275 = dma.done [#allocation5], 256
    $region45: #{feed_forward_block.1} parent=1 // pred_fallthru
      _
    %276 = vsyncpa [#allocation5], 1

</llo_original>
